<compile_context>
chip_gen: v7x
topology: tpu7x:2x2x1
jax: 0.10.0
libtpu: 0.0.40
codegen_flags: <defaults>
</compile_context>

<pallas_src>
import functools

import jax
import jax.numpy as jnp
from jax.experimental import pallas as pl
from jax.experimental.pallas import tpu as pltpu

BN_EPS = 1e-5  # PyTorch BatchNorm2d default


# ----------------------------------------------------------------------------
# Pallas kernel: one conv3x3 tile (+ optional ReLU, + optional BN partial stats)
# ----------------------------------------------------------------------------
def _conv_layer_kernel(x_ref, w_ref, y_ref, *stats_refs,
                       tile_h, out_w, emit_stats, apply_relu):
    # x_ref:     (1, 1, tile_h+2, W+2, Cin)   halo'd input tile (already padded)
    # w_ref:     (3, 3*Cin, Cout)             weights, (dh, dw*Cin, Cout)
    # y_ref:     (1, tile_h, W, Cout)         conv output tile
    # stats_refs (if emit_stats): [(1, 1, 2, Cout)] per-tile [sum, sumsq]
    th, wo = tile_h, out_w
    cin = x_ref.shape[-1]
    cout = y_ref.shape[-1]

    # Fold the three dw taps into the contraction dim: K = 3*Cin.
    # Three width-offset reads of the tile + one lane-dim concat (only ~3x the
    # tile of VMEM movement, vs 9 full slice+flatten copies previously).
    cols = [x_ref[0, 0, :, dw:dw + wo, :] for dw in range(3)]   # (th+2, wo, Cin)
    xw = jnp.concatenate(cols, axis=-1)                         # (th+2, wo, 3*Cin)

    # The three dh taps reuse free major-dim row views of `xw`; the row merge
    # (th, wo) -> th*wo keeps W/C as the minor (sublane/lane) dims.
    acc = jnp.zeros((th * wo, cout), jnp.float32)
    for dh in range(3):
        lhs = xw[dh:dh + th].reshape(th * wo, 3 * cin)
        acc = acc + jnp.dot(lhs, w_ref[dh],
                            preferred_element_type=jnp.float32)

    if emit_stats:
        # Per-tile partial BN statistics (f32), finished in the wrapper.
        s1 = jnp.sum(acc, axis=0, keepdims=True)                # (1, Cout)
        s2 = jnp.sum(acc * acc, axis=0, keepdims=True)          # (1, Cout)
        stats_refs[0][...] = jnp.concatenate([s1, s2], axis=0).reshape(
            1, 1, 2, cout)

    if apply_relu:
        acc = jnp.maximum(acc, 0.0)

    y_ref[...] = acc.reshape(1, th, wo, cout).astype(y_ref.dtype)


def conv3x3_layer(x_tiles, w_hwio, *, tile_h, out_h, out_w,
                  emit_stats, apply_relu, out_dtype):
    """One tiled conv3x3(pad=1, no bias) layer.

    x_tiles: (N, nT, tile_h+2, W+2, Cin) halo'd row tiles (compute dtype).
    Returns (y, stats) with y: (N, H, W, Cout); stats: (N, nT, 2, Cout) or None.
    """
    n, n_t, thp, wp, cin = x_tiles.shape
    cout = w_hwio.shape[-1]
    # (dh, dw, Cin, Cout) -> (dh, dw*Cin, Cout): matches the in-kernel concat
    # ordering (dw-major, cin-minor) along K.
    wk = w_hwio.reshape(3, 3 * cin, cout).astype(x_tiles.dtype)

    kern = functools.partial(_conv_layer_kernel, tile_h=tile_h, out_w=out_w,
                             emit_stats=emit_stats, apply_relu=apply_relu)

    out_shape = [jax.ShapeDtypeStruct((n, out_h, out_w, cout), out_dtype)]
    out_specs = [pl.BlockSpec((1, tile_h, out_w, cout),
                              lambda b, i: (b, i, 0, 0))]
    if emit_stats:
        out_shape.append(jax.ShapeDtypeStruct((n, n_t, 2, cout), jnp.float32))
        out_specs.append(pl.BlockSpec((1, 1, 2, cout),
                                      lambda b, i: (b, i, 0, 0)))

    call = pl.pallas_call(
        kern,
        grid=(n, n_t),
        in_specs=[
            pl.BlockSpec((1, 1, thp, wp, cin), lambda b, i: (b, i, 0, 0, 0)),
            pl.BlockSpec((3, 3 * cin, cout), lambda b, i: (0, 0, 0)),
        ],
        out_specs=out_specs if emit_stats else out_specs[0],
        out_shape=tuple(out_shape) if emit_stats else out_shape[0],
        compiler_params=pltpu.CompilerParams(
            # No cross-grid accumulation (stats are per-tile), so both axes are
            # parallel -> v7x can shard tiles across its 2 TensorCores.
            dimension_semantics=("parallel", "parallel"),
            # Blocks are sized to a few MiB; 32 MiB is safe on v5e/v6e/v7x.
            vmem_limit_bytes=32 * 1024 * 1024),
    )
    outs = call(x_tiles, wk)
    if emit_stats:
        return outs
    return outs, None


# ----------------------------------------------------------------------------
# Wrapper glue (pad + halo-window gather, BN finish, tiling choice)
# ----------------------------------------------------------------------------
def _pick_tile_h(H, W, cin_max, itemsize,
                 target_bytes=2 * 1024 * 1024, max_rows=256):
    """Largest divisor of H whose halo'd input block fits the VMEM budget."""
    best = None
    for th in range(1, min(H, max_rows) + 1):
        if H % th:
            continue
        if (th + 2) * (W + 2) * cin_max * itemsize <= target_bytes:
            best = th
    if best is None:
        # TODO(synk): extremely wide images would also need W-tiling; only the
        # H axis is tiled here, so fall back to single-row tiles.
        best = 1
    return best


def _build_input_tiles(act_nhwc, tile_h, dtype):
    """Pad by 1 and gather overlapping (tile_h+2)-row windows (fused by XLA
    with the preceding BN/ReLU epilogue into one pass over the activation)."""
    n, h, w, c = act_nhwc.shape
    assert h % tile_h == 0, (h, tile_h)
    n_t = h // tile_h
    xp = jnp.pad(act_nhwc.astype(dtype), ((0, 0), (1, 1), (1, 1), (0, 0)))
    row_idx = (jnp.arange(n_t)[:, None] * tile_h
               + jnp.arange(tile_h + 2)[None, :])          # (n_t, tile_h+2)
    return xp[:, row_idx]                                   # (n, n_t, th+2, w+2, c)


# ----------------------------------------------------------------------------
# DnCNN_c model
# ----------------------------------------------------------------------------
def init_dncnn_c_params(key, channels, num_of_layers=17, num_of_est=3,
                        features=64):
    """Deterministic synthetic parameters mirroring the torch module shapes."""
    layer_defs = [(channels + num_of_est, features, False, True)]   # conv+relu
    for _ in range(num_of_layers - 2):
        layer_defs.append((features, features, True, True))         # conv+bn+relu
    layer_defs.append((features, channels, False, False))           # conv

    params = []
    for cin, cout, use_bn, use_relu in layer_defs:
        key, k_w, k_g, k_b = jax.random.split(key, 4)
        std = (2.0 / (9.0 * cin)) ** 0.5
        w = std * jax.random.normal(k_w, (3, 3, cin, cout), jnp.float32)  # HWIO
        gamma = 1.0 + 0.1 * jax.random.normal(k_g, (cout,), jnp.float32)
        beta = 0.1 * jax.random.normal(k_b, (cout,), jnp.float32)
        params.append(dict(w=w, gamma=gamma, beta=beta,
                           use_bn=use_bn, use_relu=use_relu))
    return params


def dncnn_c_forward(params, x_nchw, c_nchw, *,
                    compute_dtype=jnp.float32, tile_h=None):
    """Pallas forward.  x: (N, channels, H, W), c: (N, num_of_est, H, W)."""
    inp = jnp.concatenate([x_nchw, c_nchw], axis=1)      # channel concat (NCHW)
    act = jnp.transpose(inp, (0, 2, 3, 1)).astype(jnp.float32)   # NHWC
    n, h, w, _ = act.shape

    cin_max = max(p["w"].shape[2] for p in params)
    if tile_h is None:
        tile_h = _pick_tile_h(h, w, cin_max, jnp.dtype(compute_dtype).itemsize)
    assert h % tile_h == 0, "tile_h must divide H"
    count = n * h * w

    for li, layer in enumerate(params):
        is_last = li == len(params) - 1
        x_tiles = _build_input_tiles(act, tile_h, compute_dtype)
        y, stats = conv3x3_layer(
            x_tiles, layer["w"],
            tile_h=tile_h, out_h=h, out_w=w,
            emit_stats=layer["use_bn"],
            apply_relu=(layer["use_relu"] and not layer["use_bn"]),
            out_dtype=jnp.float32 if is_last else compute_dtype)

        if layer["use_bn"]:
            # Finish BN from per-tile partial sums (training-mode batch stats,
            # biased variance -- matches a freshly constructed torch module).
            s = jnp.sum(stats, axis=(0, 1))              # (2, Cout), f32
            mean = s[0] / count
            var = s[1] / count - mean * mean
            scale = layer["gamma"] * jax.lax.rsqrt(var + BN_EPS)
            shift = layer["beta"] - mean * scale
            y = y.astype(jnp.float32) * scale + shift
            if layer["use_relu"]:
                y = jnp.maximum(y, 0.0)
        act = y

    return jnp.transpose(act, (0, 3, 1, 2)).astype(jnp.float32)   # NHWC -> NCHW


def dncnn_c_reference(params, x_nchw, c_nchw):
    """Pure-JAX (XLA) reference for correctness checking."""
    h = jnp.concatenate([x_nchw, c_nchw], axis=1)
    for layer in params:
        w_oihw = jnp.transpose(layer["w"], (3, 2, 0, 1))
        h = jax.lax.conv_general_dilated(
            h, w_oihw, window_strides=(1, 1), padding=((1, 1), (1, 1)),
            dimension_numbers=("NCHW", "OIHW", "NCHW"),
            precision=jax.lax.Precision.HIGHEST)
        if layer["use_bn"]:
            mean = jnp.mean(h, axis=(0, 2, 3), keepdims=True)
            var = jnp.mean((h - mean) ** 2, axis=(0, 2, 3), keepdims=True)
            h = (h - mean) * jax.lax.rsqrt(var + BN_EPS)
            h = h * layer["gamma"][None, :, None, None] \
                + layer["beta"][None, :, None, None]
        if layer["use_relu"]:
            h = jnp.maximum(h, 0.0)
    return h


# ----------------------------------------------------------------------------
# Demo
# ----------------------------------------------------------------------------
if __name__ == "__main__":
    # Small shapes consistent with the module's forward.
    N, CHANNELS, NUM_OF_EST, H, W = 2, 3, 3, 16, 16
    NUM_OF_LAYERS = 5   # keep the demo small; structure identical to default 17

    key = jax.random.PRNGKey(0)
    k_p, k_x, k_c = jax.random.split(key, 3)

    params = init_dncnn_c_params(k_p, CHANNELS, num_of_layers=NUM_OF_LAYERS,
                                 num_of_est=NUM_OF_EST)
    x = jax.random.normal(k_x, (N, CHANNELS, H, W), jnp.float32)
    c = jax.random.normal(k_c, (N, NUM_OF_EST, H, W), jnp.float32)

    ref = jax.block_until_ready(dncnn_c_reference(params, x, c))

    # f32 path: strict check (tile_h=8 -> 2 row-tiles per image -> real grid).
    out_f32 = jax.block_until_ready(
        dncnn_c_forward(params, x, c, compute_dtype=jnp.float32, tile_h=8))
    assert out_f32.shape == (N, CHANNELS, H, W)
    err32 = jnp.max(jnp.abs(out_f32 - ref))
    assert jnp.allclose(out_f32, ref, atol=1e-2, rtol=1e-2), \
        f"f32 max abs err = {err32}"

    # bf16 MXU path (perf config): f32 accumulation + f32 BN stats, loose check.
    out_bf16 = jax.block_until_ready(
        dncnn_c_forward(params, x, c, compute_dtype=jnp.bfloat16, tile_h=8))
    errbf = jnp.max(jnp.abs(out_bf16 - ref))
    assert jnp.allclose(out_bf16, ref, atol=1e-1, rtol=1e-1), \
        f"bf16 max abs err = {errbf}"

    print("KERNEL_OK")
</pallas_src>

<mosaic_0001>
module attributes {stable_mosaic.version = 11 : i64} {
  func.func @_conv_layer_kernel(%arg0: i32, %arg1: i32, %arg2: memref<1x1x10x18x6xf32, #tpu.memory_space<vmem>>, %arg3: memref<3x18x64xf32, #tpu.memory_space<vmem>>, %arg4: memref<1x8x16x64xf32, #tpu.memory_space<vmem>>) attributes {dimension_semantics = [#tpu.dimension_semantics<parallel>, #tpu.dimension_semantics<parallel>], iteration_bounds = array<i64: 2, 2>, scalar_prefetch = 0 : i64, scratch_operands = 0 : i64, tpu.core_type = #tpu.core_type<tc>, window_params = [{transform_indices = @transform_0, window_bounds = array<i64: 1, 1, 10, 18, 6>}, {pipeline_mode = #tpu.pipeline_mode<synchronous>, transform_indices = @transform_1, window_bounds = array<i64: 3, 18, 64>}, {transform_indices = @transform_2, window_bounds = array<i64: 1, 8, 16, 64>}]} {
    %c0 = arith.constant 0 : index
    %c0_0 = arith.constant 0 : index
    %c0_1 = arith.constant 0 : index
    %c0_2 = arith.constant 0 : index
    %c0_3 = arith.constant 0 : index
    %0 = vector.load %arg2[%c0, %c0_0, %c0_1, %c0_2, %c0_3] : memref<1x1x10x18x6xf32, #tpu.memory_space<vmem>>, vector<1x1x10x16x6xf32>
    %1 = vector.shape_cast %0 : vector<1x1x10x16x6xf32> to vector<10x16x6xf32>
    %c0_4 = arith.constant 0 : index
    %c0_5 = arith.constant 0 : index
    %c0_6 = arith.constant 0 : index
    %c1 = arith.constant 1 : index
    %c0_7 = arith.constant 0 : index
    %2 = vector.load %arg2[%c0_4, %c0_5, %c0_6, %c1, %c0_7] : memref<1x1x10x18x6xf32, #tpu.memory_space<vmem>>, vector<1x1x10x16x6xf32>
    %3 = vector.shape_cast %2 : vector<1x1x10x16x6xf32> to vector<10x16x6xf32>
    %c0_8 = arith.constant 0 : index
    %c0_9 = arith.constant 0 : index
    %c0_10 = arith.constant 0 : index
    %c2 = arith.constant 2 : index
    %c0_11 = arith.constant 0 : index
    %4 = vector.load %arg2[%c0_8, %c0_9, %c0_10, %c2, %c0_11] : memref<1x1x10x18x6xf32, #tpu.memory_space<vmem>>, vector<1x1x10x16x6xf32>
    %5 = vector.shape_cast %4 : vector<1x1x10x16x6xf32> to vector<10x16x6xf32>
    %6 = tpu.concatenate %1, %3, %5 in 2 : vector<10x16x6xf32>, vector<10x16x6xf32>, vector<10x16x6xf32> -> vector<10x16x18xf32>
    %cst = arith.constant 0.000000e+00 : f32
    %7 = vector.broadcast %cst : f32 to vector<128x64xf32>
    %8 = vector.extract_strided_slice %6 {offsets = [0, 0, 0], sizes = [8, 16, 18], strides = [1, 1, 1]} : vector<10x16x18xf32> to vector<8x16x18xf32>
    %9 = vector.shape_cast %8 : vector<8x16x18xf32> to vector<128x18xf32>
    %c0_12 = arith.constant 0 : index
    %c0_13 = arith.constant 0 : index
    %c0_14 = arith.constant 0 : index
    %10 = vector.load %arg3[%c0_12, %c0_13, %c0_14] : memref<3x18x64xf32, #tpu.memory_space<vmem>>, vector<1x18x64xf32>
    %11 = vector.shape_cast %10 : vector<1x18x64xf32> to vector<18x64xf32>
    %cst_15 = arith.constant dense<0.000000e+00> : vector<128x64xf32>
    %12 = tpu.matmul %9, %11, %cst_15 {dimension_numbers = #tpu.dot_dimension_numbers<[1], [0], [0], [1], [0, 0, 1, 1], [], []>} : vector<128x18xf32>, vector<18x64xf32>, vector<128x64xf32> -> vector<128x64xf32>
    %13 = arith.addf %7, %12 : vector<128x64xf32>
    %14 = vector.extract_strided_slice %6 {offsets = [1, 0, 0], sizes = [8, 16, 18], strides = [1, 1, 1]} : vector<10x16x18xf32> to vector<8x16x18xf32>
    %15 = vector.shape_cast %14 : vector<8x16x18xf32> to vector<128x18xf32>
    %c1_16 = arith.constant 1 : index
    %c0_17 = arith.constant 0 : index
    %c0_18 = arith.constant 0 : index
    %16 = vector.load %arg3[%c1_16, %c0_17, %c0_18] : memref<3x18x64xf32, #tpu.memory_space<vmem>>, vector<1x18x64xf32>
    %17 = vector.shape_cast %16 : vector<1x18x64xf32> to vector<18x64xf32>
    %cst_19 = arith.constant dense<0.000000e+00> : vector<128x64xf32>
    %18 = tpu.matmul %15, %17, %cst_19 {dimension_numbers = #tpu.dot_dimension_numbers<[1], [0], [0], [1], [0, 0, 1, 1], [], []>} : vector<128x18xf32>, vector<18x64xf32>, vector<128x64xf32> -> vector<128x64xf32>
    %19 = arith.addf %13, %18 : vector<128x64xf32>
    %20 = vector.extract_strided_slice %6 {offsets = [2, 0, 0], sizes = [8, 16, 18], strides = [1, 1, 1]} : vector<10x16x18xf32> to vector<8x16x18xf32>
    %21 = vector.shape_cast %20 : vector<8x16x18xf32> to vector<128x18xf32>
    %c2_20 = arith.constant 2 : index
    %c0_21 = arith.constant 0 : index
    %c0_22 = arith.constant 0 : index
    %22 = vector.load %arg3[%c2_20, %c0_21, %c0_22] : memref<3x18x64xf32, #tpu.memory_space<vmem>>, vector<1x18x64xf32>
    %23 = vector.shape_cast %22 : vector<1x18x64xf32> to vector<18x64xf32>
    %cst_23 = arith.constant dense<0.000000e+00> : vector<128x64xf32>
    %24 = tpu.matmul %21, %23, %cst_23 {dimension_numbers = #tpu.dot_dimension_numbers<[1], [0], [0], [1], [0, 0, 1, 1], [], []>} : vector<128x18xf32>, vector<18x64xf32>, vector<128x64xf32> -> vector<128x64xf32>
    %25 = arith.addf %19, %24 : vector<128x64xf32>
    %cst_24 = arith.constant 0.000000e+00 : f32
    %26 = vector.broadcast %cst_24 : f32 to vector<128x64xf32>
    %27 = arith.maximumf %25, %26 : vector<128x64xf32>
    %28 = vector.shape_cast %27 : vector<128x64xf32> to vector<1x8x16x64xf32>
    %c0_25 = arith.constant 0 : index
    %c0_26 = arith.constant 0 : index
    %c0_27 = arith.constant 0 : index
    %c0_28 = arith.constant 0 : index
    %29 = vector.load %arg4[%c0_25, %c0_26, %c0_27, %c0_28] : memref<1x8x16x64xf32, #tpu.memory_space<vmem>>, vector<1x8x16x64xf32>
    tpu.vector_store %arg4[%c0_25, %c0_26, %c0_27, %c0_28], %28 {strides = array<i32>} : memref<1x8x16x64xf32, #tpu.memory_space<vmem>>, vector<1x8x16x64xf32>,
    return
  }
  func.func @transform_0(%arg0: i32, %arg1: i32) -> (i32, i32, i32, i32, i32) {
    %c0_i32 = arith.constant 0 : i32
    %c0_i32_0 = arith.constant 0 : i32
    %c0_i32_1 = arith.constant 0 : i32
    %c0_i32_2 = arith.constant 0 : i32
    return %arg0, %arg1, %c0_i32, %c0_i32_0, %c0_i32_1 : i32, i32, i32, i32, i32
  }
  func.func @transform_1(%arg0: i32, %arg1: i32) -> (i32, i32, i32) {
    %c0_i32 = arith.constant 0 : i32
    %c0_i32_0 = arith.constant 0 : i32
    %c0_i32_1 = arith.constant 0 : i32
    %c0_i32_2 = arith.constant 0 : i32
    return %c0_i32, %c0_i32_0, %c0_i32_1 : i32, i32, i32
  }
  func.func @transform_2(%arg0: i32, %arg1: i32) -> (i32, i32, i32, i32) {
    %c0_i32 = arith.constant 0 : i32
    %c0_i32_0 = arith.constant 0 : i32
    %c0_i32_1 = arith.constant 0 : i32
    return %arg0, %arg1, %c0_i32, %c0_i32_0 : i32, i32, i32, i32
  }
}

</mosaic_0001>

<llo_original>
// kernel: tpu_custom_call.1
$region0: #{tpu_custom_call.1}
  #allocation0 [shape = 'u32[]', space=smem, size = 0x4, offset = 0x4, fixed_abs, tag = 'smem constant byte address 0x4 - core index']
  #allocation1 [shape = 'u32[144,128]{1,0:T(1,128)}', space=vmem, size = 0x12000, scoped, tag = 'internal scratch']
  %s0 = inlined_call_operand.vmem [shape: f32[2,2,10,18,6], index: 0, kind: input, shape index: {}]
  %s1 = inlined_call_operand.vmem [shape: f32[3,18,64], index: 1, kind: input, shape index: {}]
  %s2 = inlined_call_operand.hbm [shape: f32[2,16,16,64], index: 2, kind: output, shape index: {}]
  %s3 = sld [smem:[#allocation0]]
  $region41: #{tpu_custom_call.1} parent=0
    _
  %s5 = ssub.s32 1, %s3
  %s6 = scalar_select 0, %s5, %s3
  $region1: #{tpu_custom_call.1} parent=0
    #allocation2 [shape = 'u8[131072]{0}', space=vmem, size = 0x20000, scoped, tag = 'output window, operand 0']
    #allocation3 [shape = 's32[2]{0}', space=sflag, size = 0x8, scoped, tag = 'scoped memory for tpu_custom_call.1']
    %7 = vsyncpa [#allocation3], 0
    %s8 = scalar_lea.sflag [#allocation3], 1
    %9 = vsyncpa %s8, 0
    loop: start=0, step=1, limit=6
    $region2: #{tpu_custom_call.1} parent=1 // loop_pre_header
      _
    $region3: #{tpu_custom_call.1} parent=1 // loop_header
      %s11 = sphi 0, %s15
      %p12 = scmp.ge.s32.totalorder %s11, 6
      %s18 = sphi 0, %s30
      %s19 = sphi 0, %s26
      %s20 = sphi 0, %s18
      %s21 = sphi 0, %s19
      %s22 = sphi 0, %s20
      %s23 = sphi 0, %s21
      %s35 = sphi 0, %s37
      %s38 = sphi 0, %s35
      %s39 = sphi 0, %s38
      %s55 = sphi 0, %s39
      %s59 = sphi 0, %s59
      %s61 = sphi 0, %s59
      %s62 = sphi 0, %s61
      %s76 = sphi 0, %s62
      %s84 = sphi 0, %s86
      %s87 = sphi 0, %s84
      %s88 = sphi 0, %s87
      %s104 = sphi 0, %s88
    $region4: #{tpu_custom_call.1} parent=1 // loop_header_branch
      %14 = sbr.rel (%p12) target = $region8
    $region5: #{tpu_custom_call.1} parent=1 // loop_body
      %s16 = ssub.s32 %s11, 1
      %s17 = ssub.s32 %s11, 2
      %s24 = sadd.s32 1, %s19
      %p25 = scmp.ge.s32.totalorder %s24, 2
      %s26 = scalar_select %p25, 0, %s24
      %s27 = sadd.s32 1, %s18
      %s28 = scalar_select %p25, %s27, %s18
      %p29 = scmp.ge.s32.totalorder %s28, 2
      %s30 = scalar_select %p29, 0, %s28
      %s31 = ssub.s32 %s18, %s30
      %s32 = ssub.s32 %s19, %s26
      %s33 = sor.u32 %s31, %s32
      %p34 = scmp.eq.s32.totalorder %s33, 0
      %s36 = sadd.s32 %s35, 1
      %s37 = scalar_select %p34, %s35, %s36
      %p40 = pneg %p34
      %p41 = scmp.eq.s32.totalorder %s11, 3
      %p42 = por %p40, %p41
      %p43 = scmp.ne.s32.totalorder %s35, %s38
      %p44 = scmp.eq.s32.totalorder %s11, 0
      %p45 = por %p43, %p44
      %p46 = scmp.ne.s32.totalorder %s35, %s38
      %p47 = scmp.eq.s32.totalorder %s16, 3
      %p48 = por %p46, %p47
      %p49 = scmp.ne.s32.totalorder %s38, %s39
      %p50 = scmp.eq.s32.totalorder %s16, 0
      %p51 = por %p49, %p50
      %p52 = scmp.ne.s32.totalorder %s38, %s39
      %p53 = scmp.eq.s32.totalorder %s17, 3
      %p54 = por %p52, %p53
      %p56 = scmp.ne.s32.totalorder %s39, %s55
      %p57 = scmp.eq.s32.totalorder %s17, 0
      %p58 = por %p56, %p57
      %s60 = sadd.s32 %s59, 1
      %p63 = scmp.eq.s32.totalorder %s11, 3
      %p64 = scmp.ne.s32.totalorder %s59, %s61
      %p65 = scmp.eq.s32.totalorder %s11, 0
      %p66 = por %p64, %p65
      %p67 = scmp.ne.s32.totalorder %s59, %s61
      %p68 = scmp.eq.s32.totalorder %s16, 3
      %p69 = por %p67, %p68
      %p70 = scmp.ne.s32.totalorder %s61, %s62
      %p71 = scmp.eq.s32.totalorder %s16, 0
      %p72 = por %p70, %p71
      %p73 = scmp.ne.s32.totalorder %s61, %s62
      %p74 = scmp.eq.s32.totalorder %s17, 3
      %p75 = por %p73, %p74
      %p77 = scmp.ne.s32.totalorder %s62, %s76
      %p78 = scmp.eq.s32.totalorder %s17, 0
      %p79 = por %p77, %p78
      %s80 = ssub.s32 %s18, %s30
      %s81 = ssub.s32 %s19, %s26
      %s82 = sor.u32 %s80, %s81
      %p83 = scmp.eq.s32.totalorder %s82, 0
      %s85 = sadd.s32 %s84, 1
      %s86 = scalar_select %p83, %s84, %s85
      %p89 = pneg %p83
      %p90 = scmp.eq.s32.totalorder %s11, 3
      %p91 = por %p89, %p90
      %p92 = scmp.ne.s32.totalorder %s84, %s87
      %p93 = scmp.eq.s32.totalorder %s11, 0
      %p94 = por %p92, %p93
      %p95 = scmp.ne.s32.totalorder %s84, %s87
      %p96 = scmp.eq.s32.totalorder %s16, 3
      %p97 = por %p95, %p96
      %p98 = scmp.ne.s32.totalorder %s87, %s88
      %p99 = scmp.eq.s32.totalorder %s16, 0
      %p100 = por %p98, %p99
      %p101 = scmp.ne.s32.totalorder %s87, %s88
      %p102 = scmp.eq.s32.totalorder %s17, 3
      %p103 = por %p101, %p102
      %p105 = scmp.ne.s32.totalorder %s88, %s104
      %p106 = scmp.eq.s32.totalorder %s17, 0
      %p107 = por %p105, %p106
      %p108 = scmp.le.s32.totalorder 1, %s11
      %p109 = scmp.lt.s32.totalorder %s11, 5
      %p110 = pnand %p108, %p109
      %p111 = pneg %p110
      // Predicated region
      $region9: #{tpu_custom_call.1} parent=5 // pred_check
        _
      $region10: #{tpu_custom_call.1} parent=5 // pred_check_branch
        %113 = sbr.rel (%p110) target = $region12
      $region11: #{tpu_custom_call.1} parent=5 // pred_region
        %s114 = ssub.s32 %s11, 1
        // Predicated region
        $region13: #{tpu_custom_call.1} parent=11 // pred_check
          %p115 = pneg %p72
        $region14: #{tpu_custom_call.1} parent=11 // pred_check_branch
          %117 = sbr.rel (%p115) target = $region16
        $region15: #{tpu_custom_call.1} parent=11 // pred_region
          _
        $region16: #{tpu_custom_call.1} parent=11 // pred_fallthru
          _
      $region12: #{tpu_custom_call.1} parent=5 // pred_fallthru
        _
      %p118 = scmp.lt.s32.totalorder %s11, 4
      // Predicated region
      $region17: #{tpu_custom_call.1} parent=5 // pred_check
        %p119 = pneg %p118
      $region18: #{tpu_custom_call.1} parent=5 // pred_check_branch
        %121 = sbr.rel (%p119) target = $region20
      $region19: #{tpu_custom_call.1} parent=5 // pred_region
        // Predicated region
        $region21: #{tpu_custom_call.1} parent=19 // pred_check
          %p122 = pneg %p45
        $region22: #{tpu_custom_call.1} parent=19 // pred_check_branch
          %124 = sbr.rel (%p122) target = $region24
        $region23: #{tpu_custom_call.1} parent=19 // pred_region
          %p125 = scmp.lt.s32.totalorder %s18, 1
          %s126 = scalar_select %p125, %s18, 1
          %p127 = scmp.lt.s32.totalorder %s19, 1
          %s128 = scalar_select %p127, %s19, 1
          %s129 = smul.addr %s128, 30
          %s130 = smul.addr %s126, 60
          %s131 = sadd.s32 %s129, %s130
          %s132 = smul.addr %s131, 8
          %s133 = scalar_lea.vmem %s0, %s132
        $region24: #{tpu_custom_call.1} parent=19 // pred_fallthru
          _
      $region20: #{tpu_custom_call.1} parent=5 // pred_fallthru
        _
      %p134 = scmp.le.s32.totalorder 1, %s11
      %p135 = scmp.lt.s32.totalorder %s11, 5
      %p136 = pnand %p134, %p135
      %p137 = pneg %p136
      // Predicated region
      $region25: #{tpu_custom_call.1} parent=5 // pred_check
        _
      $region26: #{tpu_custom_call.1} parent=5 // pred_check_branch
        %139 = sbr.rel (%p136) target = $region28
      $region27: #{tpu_custom_call.1} parent=5 // pred_region
        %s140 = ssub.s32 %s11, 1
        %p141 = scmp.lt.s32.totalorder %s20, 1
        %s142 = scalar_select %p141, %s20, 1
        %p143 = scmp.lt.s32.totalorder %s21, 1
        %s144 = scalar_select %p143, %s21, 1
        %s145 = smul.addr %s144, 30
        %s146 = smul.addr %s142, 60
        %s147 = sadd.s32 %s145, %s146
        %s148 = smul.addr %s147, 8
        %s149 = scalar_lea.vmem %s0, %s148
        %p150 = pneg %p51
        %p151 = pneg %p48
        %p152 = pneg %p72
        %p153 = pneg %p69
        %p154 = pneg %p100
        %p155 = pneg %p97
        %s156 = sand.u32 %s87, 1
        %s157 = scalar_lea.sflag [#allocation3], %s156
        %s158 = sand.u32 %s87, 1
        %s159 = smul.addr %s158, 128
        %s160 = scalar_lea.vmem [#allocation2], %s159
        %p161 = scmp.lt.s32.totalorder %s20, 1
        %s162 = scalar_select %p161, %s20, 1
        %p163 = scmp.lt.s32.totalorder %s21, 1
        %s164 = scalar_select %p163, %s21, 1
        %s165 = smul.addr %s164, 30
        %s166 = smul.addr %s162, 60
        %s167 = sadd.s32 %s165, %s166
        %s168 = smul.addr %s167, 8
        %s169 = scalar_lea.vmem %s0, %s168
        %s170 = smul.u32 8, %s21
        %v171 = vld [vmem:[%s169] sm:$0xff]
        %v172 = vld [vmem:[%s169 + $0x8] sm:$0xff]
        %v173 = vld [vmem:[%s169 + $0x18] sm:$0xff]
        %v174 = vld [vmem:[%s169 + $0x20] sm:$0xff]
        %v175 = vld [vmem:[%s169 + $0x30] sm:$0xff]
        %v176 = vld [vmem:[%s169 + $0x38] sm:$0xff]
        %v177 = vld [vmem:[%s169 + $0x48] sm:$0xff]
        %v178 = vld [vmem:[%s169 + $0x50] sm:$0xff]
        %v179 = vld [vmem:[%s169 + $0x60] sm:$0xff]
        %v180 = vld [vmem:[%s169 + $0x68] sm:$0xff]
        %v181 = vld [vmem:[%s169 + $0x78] sm:$0xff]
        %v182 = vld [vmem:[%s169 + $0x80] sm:$0xff]
        %v183 = vld [vmem:[%s169 + $0x90] sm:$0xff]
        %v184 = vld [vmem:[%s169 + $0x98] sm:$0xff]
        %v185 = vld [vmem:[%s169 + $0xa8] sm:$0xff]
        %v186 = vld [vmem:[%s169 + $0xb0] sm:$0xff]
        %v187 = vld [vmem:[%s169 + $0xc0] sm:$0xff]
        %v188 = vld [vmem:[%s169 + $0xc8] sm:$0xff]
        %v189 = vld [vmem:[%s169 + $0xd8] sm:$0xff]
        %v190 = vld [vmem:[%s169 + $0xe0] sm:$0xff]
        %v191 = vld [vmem:[%s169 + $0x1] sm:$0xff]
        %v192 = vld [vmem:[%s169 + $0x9] sm:$0xff]
        %v193 = vld [vmem:[%s169 + $0x19] sm:$0xff]
        %v194 = vld [vmem:[%s169 + $0x21] sm:$0xff]
        %v195 = vld [vmem:[%s169 + $0x31] sm:$0xff]
        %v196 = vld [vmem:[%s169 + $0x39] sm:$0xff]
        %v197 = vld [vmem:[%s169 + $0x49] sm:$0xff]
        %v198 = vld [vmem:[%s169 + $0x51] sm:$0xff]
        %v199 = vld [vmem:[%s169 + $0x61] sm:$0xff]
        %v200 = vld [vmem:[%s169 + $0x69] sm:$0xff]
        %v201 = vld [vmem:[%s169 + $0x79] sm:$0xff]
        %v202 = vld [vmem:[%s169 + $0x81] sm:$0xff]
        %v203 = vld [vmem:[%s169 + $0x91] sm:$0xff]
        %v204 = vld [vmem:[%s169 + $0x99] sm:$0xff]
        %v205 = vld [vmem:[%s169 + $0xa9] sm:$0xff]
        %v206 = vld [vmem:[%s169 + $0xb1] sm:$0xff]
        %v207 = vld [vmem:[%s169 + $0xc1] sm:$0xff]
        %v208 = vld [vmem:[%s169 + $0xc9] sm:$0xff]
        %v209 = vld [vmem:[%s169 + $0xd9] sm:$0xff]
        %v210 = vld [vmem:[%s169 + $0xe1] sm:$0xff]
        %v211 = vld [vmem:[%s169 + $0x2] sm:$0xff]
        %v212 = vld [vmem:[%s169 + $0xa] sm:$0xff]
        %v213 = vld [vmem:[%s169 + $0x1a] sm:$0xff]
        %v214 = vld [vmem:[%s169 + $0x22] sm:$0xff]
        %v215 = vld [vmem:[%s169 + $0x32] sm:$0xff]
        %v216 = vld [vmem:[%s169 + $0x3a] sm:$0xff]
        %v217 = vld [vmem:[%s169 + $0x4a] sm:$0xff]
        %v218 = vld [vmem:[%s169 + $0x52] sm:$0xff]
        %v219 = vld [vmem:[%s169 + $0x62] sm:$0xff]
        %v220 = vld [vmem:[%s169 + $0x6a] sm:$0xff]
        %v221 = vld [vmem:[%s169 + $0x7a] sm:$0xff]
        %v222 = vld [vmem:[%s169 + $0x82] sm:$0xff]
        %v223 = vld [vmem:[%s169 + $0x92] sm:$0xff]
        %v224 = vld [vmem:[%s169 + $0x9a] sm:$0xff]
        %v225 = vld [vmem:[%s169 + $0xaa] sm:$0xff]
        %v226 = vld [vmem:[%s169 + $0xb2] sm:$0xff]
        %v227 = vld [vmem:[%s169 + $0xc2] sm:$0xff]
        %v228 = vld [vmem:[%s169 + $0xca] sm:$0xff]
        %v229 = vld [vmem:[%s169 + $0xda] sm:$0xff]
        %v230 = vld [vmem:[%s169 + $0xe2] sm:$0xff]
        %251 = vrot.lane.b32.xlu0 %v191, 6
        %v252 = vpop.permute.xlu0 %251
        %253 = vrot.lane.b32.xlu0 %v192, 6
        %v254 = vpop.permute.xlu0 %253
        %255 = vrot.lane.b32.xlu0 %v193, 6
        %v256 = vpop.permute.xlu0 %255
        %257 = vrot.lane.b32.xlu0 %v194, 6
        %v258 = vpop.permute.xlu0 %257
        %259 = vrot.lane.b32.xlu0 %v195, 6
        %v260 = vpop.permute.xlu0 %259
        %261 = vrot.lane.b32.xlu0 %v196, 6
        %v262 = vpop.permute.xlu0 %261
        %263 = vrot.lane.b32.xlu0 %v197, 6
        %v264 = vpop.permute.xlu0 %263
        %265 = vrot.lane.b32.xlu0 %v198, 6
        %v266 = vpop.permute.xlu0 %265
        %267 = vrot.lane.b32.xlu0 %v199, 6
        %v268 = vpop.permute.xlu0 %267
        %269 = vrot.lane.b32.xlu0 %v200, 6
        %v270 = vpop.permute.xlu0 %269
        %271 = vrot.lane.b32.xlu0 %v201, 6
        %v272 = vpop.permute.xlu0 %271
        %273 = vrot.lane.b32.xlu0 %v202, 6
        %v274 = vpop.permute.xlu0 %273
        %275 = vrot.lane.b32.xlu0 %v203, 6
        %v276 = vpop.permute.xlu0 %275
        %277 = vrot.lane.b32.xlu0 %v204, 6
        %v278 = vpop.permute.xlu0 %277
        %279 = vrot.lane.b32.xlu0 %v205, 6
        %v280 = vpop.permute.xlu0 %279
        %281 = vrot.lane.b32.xlu0 %v206, 6
        %v282 = vpop.permute.xlu0 %281
        %283 = vrot.lane.b32.xlu0 %v207, 6
        %v284 = vpop.permute.xlu0 %283
        %285 = vrot.lane.b32.xlu0 %v208, 6
        %v286 = vpop.permute.xlu0 %285
        %287 = vrot.lane.b32.xlu0 %v209, 6
        %v288 = vpop.permute.xlu0 %287
        %289 = vrot.lane.b32.xlu0 %v210, 6
        %v290 = vpop.permute.xlu0 %289
        %331 = vrot.lane.b32.xlu0 %v211, 12
        %v332 = vpop.permute.xlu0 %331
        %333 = vrot.lane.b32.xlu0 %v212, 12
        %v334 = vpop.permute.xlu0 %333
        %335 = vrot.lane.b32.xlu0 %v213, 12
        %v336 = vpop.permute.xlu0 %335
        %337 = vrot.lane.b32.xlu0 %v214, 12
        %v338 = vpop.permute.xlu0 %337
        %339 = vrot.lane.b32.xlu0 %v215, 12
        %v340 = vpop.permute.xlu0 %339
        %341 = vrot.lane.b32.xlu0 %v216, 12
        %v342 = vpop.permute.xlu0 %341
        %343 = vrot.lane.b32.xlu0 %v217, 12
        %v344 = vpop.permute.xlu0 %343
        %345 = vrot.lane.b32.xlu0 %v218, 12
        %v346 = vpop.permute.xlu0 %345
        %347 = vrot.lane.b32.xlu0 %v219, 12
        %v348 = vpop.permute.xlu0 %347
        %349 = vrot.lane.b32.xlu0 %v220, 12
        %v350 = vpop.permute.xlu0 %349
        %351 = vrot.lane.b32.xlu0 %v221, 12
        %v352 = vpop.permute.xlu0 %351
        %353 = vrot.lane.b32.xlu0 %v222, 12
        %v354 = vpop.permute.xlu0 %353
        %355 = vrot.lane.b32.xlu0 %v223, 12
        %v356 = vpop.permute.xlu0 %355
        %357 = vrot.lane.b32.xlu0 %v224, 12
        %v358 = vpop.permute.xlu0 %357
        %359 = vrot.lane.b32.xlu0 %v225, 12
        %v360 = vpop.permute.xlu0 %359
        %361 = vrot.lane.b32.xlu0 %v226, 12
        %v362 = vpop.permute.xlu0 %361
        %363 = vrot.lane.b32.xlu0 %v227, 12
        %v364 = vpop.permute.xlu0 %363
        %365 = vrot.lane.b32.xlu0 %v228, 12
        %v366 = vpop.permute.xlu0 %365
        %367 = vrot.lane.b32.xlu0 %v229, 12
        %v368 = vpop.permute.xlu0 %367
        %369 = vrot.lane.b32.xlu0 %v230, 12
        %v370 = vpop.permute.xlu0 %369
        %vm391 = vcmask 48128
        %v392 = vsel %vm391, %v171, %v252
        %v393 = vsel %vm391, %v172, %v254
        %v394 = vsel %vm391, %v173, %v256
        %v395 = vsel %vm391, %v174, %v258
        %v396 = vsel %vm391, %v175, %v260
        %v397 = vsel %vm391, %v176, %v262
        %v398 = vsel %vm391, %v177, %v264
        %v399 = vsel %vm391, %v178, %v266
        %v400 = vsel %vm391, %v179, %v268
        %v401 = vsel %vm391, %v180, %v270
        %v402 = vsel %vm391, %v181, %v272
        %v403 = vsel %vm391, %v182, %v274
        %v404 = vsel %vm391, %v183, %v276
        %v405 = vsel %vm391, %v184, %v278
        %v406 = vsel %vm391, %v185, %v280
        %v407 = vsel %vm391, %v186, %v282
        %v408 = vsel %vm391, %v187, %v284
        %v409 = vsel %vm391, %v188, %v286
        %v410 = vsel %vm391, %v189, %v288
        %v411 = vsel %vm391, %v190, %v290
        %vm412 = vcmask 97280
        %v413 = vsel %vm412, %v392, %v332
        %v414 = vsel %vm412, %v393, %v334
        %v415 = vsel %vm412, %v394, %v336
        %v416 = vsel %vm412, %v395, %v338
        %v417 = vsel %vm412, %v396, %v340
        %v418 = vsel %vm412, %v397, %v342
        %v419 = vsel %vm412, %v398, %v344
        %v420 = vsel %vm412, %v399, %v346
        %v421 = vsel %vm412, %v400, %v348
        %v422 = vsel %vm412, %v401, %v350
        %v423 = vsel %vm412, %v402, %v352
        %v424 = vsel %vm412, %v403, %v354
        %v425 = vsel %vm412, %v404, %v356
        %v426 = vsel %vm412, %v405, %v358
        %v427 = vsel %vm412, %v406, %v360
        %v428 = vsel %vm412, %v407, %v362
        %v429 = vsel %vm412, %v408, %v364
        %v430 = vsel %vm412, %v409, %v366
        %v431 = vsel %vm412, %v410, %v368
        %v432 = vsel %vm412, %v411, %v370
        %v433 = vld [vmem:[%s1] sm:$0xff]
        %v434 = vld [vmem:[%s1 + $0x8] sm:$0xff]
        %v435 = vld [vmem:[%s1 + $0x10] sm:$0x3]
        %s436 = scalar_lea.vmem %s1, 24
        %v437 = vld [vmem:[%s436] sm:$0xff]
        %v438 = vld [vmem:[%s436 + $0x8] sm:$0xff]
        %v439 = vld [vmem:[%s436 + $0x10] sm:$0x3]
        %vm440 = vcmask 146432
        %v442 = vsel %vm440, %v415, 0
        %v445 = vsel %vm440, %v416, 0
        %v448 = vsel %vm440, %v417, 0
        %v451 = vsel %vm440, %v418, 0
        %v454 = vsel %vm440, %v419, 0
        %v457 = vsel %vm440, %v420, 0
        %v460 = vsel %vm440, %v421, 0
        %v463 = vsel %vm440, %v422, 0
        %v466 = vsel %vm440, %v423, 0
        %v469 = vsel %vm440, %v424, 0
        %v472 = vsel %vm440, %v425, 0
        %v475 = vsel %vm440, %v426, 0
        %v478 = vsel %vm440, %v427, 0
        %v481 = vsel %vm440, %v428, 0
        %v484 = vsel %vm440, %v429, 0
        %v487 = vsel %vm440, %v430, 0
        %vm489 = vcmask 1041408
        %v491 = vsel %vm489, %v439, 0
        %493 = vmatprep.subr.mxu0 0.0
        %494 = vmatpush1.msra.mxu0 %v437
        %495 = vmatprep.subr.mxu0 0.0
        %496 = vmatpush1.msra.mxu0 %v438
        %497 = vmatprep.subr.mxu0 0.0
        %498 = vmatpush1.msra.mxu0 %v491
        %499 = vmatprep.subr.mxu0 0.0
        %500 = vmatpush1.msra.mxu0 0.0
        %501 = vmatprep.subr.mxu0 0.0
        %502 = vmatpush1.msra.mxu0 0.0
        %503 = vmatprep.subr.mxu0 0.0
        %504 = vmatpush1.msra.mxu0 0.0
        %505 = vmatprep.subr.mxu0 0.0
        %506 = vmatpush1.msra.mxu0 0.0
        %507 = vmatprep.subr.mxu0 0.0
        %508 = vmatpush1.msra.mxu0 0.0
        %509 = vmatprep.subr.mxu0 0.0
        %510 = vmatpush1.msra.mxu0 0.0
        %511 = vmatprep.subr.mxu0 0.0
        %512 = vmatpush1.msra.mxu0 0.0
        %513 = vmatprep.subr.mxu0 0.0
        %514 = vmatpush1.msra.mxu0 0.0
        %515 = vmatprep.subr.mxu0 0.0
        %516 = vmatpush1.msra.mxu0 0.0
        %517 = vmatprep.subr.mxu0 0.0
        %518 = vmatpush1.msra.mxu0 0.0
        %519 = vmatprep.subr.mxu0 0.0
        %520 = vmatpush1.msra.mxu0 0.0
        %521 = vmatprep.subr.mxu0 0.0
        %522 = vmatpush1.msra.mxu0 0.0
        %523 = vmatprep.subr.mxu0 0.0
        %524 = vmatpush1.msra.mxu0 0.0
        %525 = vmatprep.subr.mxu0 0.0
        %526 = vmatpush1.msra.mxu0 0.0
        %527 = vmatprep.subr.mxu0 0.0
        %528 = vmatpush1.msra.mxu0 0.0
        %529 = vmatprep.subr.mxu0 0.0
        %530 = vmatpush1.msra.mxu0 0.0
        %531 = vmatprep.subr.mxu0 0.0
        %532 = vmatpush1.msra.mxu0 0.0
        %533 = vmatprep.subr.mxu0 0.0
        %534 = vmatpush1.msra.mxu0 0.0
        %535 = vmatprep.subr.mxu0 0.0
        %536 = vmatpush1.msra.mxu0 0.0
        %537 = vmatprep.subr.mxu0 0.0
        %538 = vmatpush1.msra.mxu0 0.0
        %539 = vmatprep.subr.mxu0 0.0
        %540 = vmatpush1.msra.mxu0 0.0
        %541 = vmatprep.subr.mxu0 0.0
        %542 = vmatpush1.msra.mxu0 0.0
        %543 = vmatprep.subr.mxu0 0.0
        %544 = vmatpush1.msra.mxu0 0.0
        %545 = vmatprep.subr.mxu0 0.0
        %546 = vmatpush1.msra.mxu0 0.0
        %547 = vmatprep.subr.mxu0 0.0
        %548 = vmatpush1.msra.mxu0 0.0
        %549 = vmatprep.subr.mxu0 0.0
        %550 = vmatpush1.msra.mxu0 0.0
        %551 = vmatprep.subr.mxu0 0.0
        %552 = vmatpush1.msra.mxu0 0.0
        %553 = vmatprep.subr.mxu0 0.0
        %554 = vmatpush1.msra.mxu0 0.0
        %555 = vmatprep.subr.mxu0 0.0
        %556 = vmatpush1.msra.mxu0 0.0
        %557 = vmatprep.mubr.f32.mxu0 0.0
        %558 = vmatmul.mubr.f32.gmra.mrb[0].mxu0 %v442
        %v559 = vpop.f32.mrb[0].mxu0
        %v560 = vadd.f32 0.0, %v559
        %v561 = vpop.f32.mrb[0].mxu0
        %562 = vmatprep.mubr.f32.mxu0 0.0
        %563 = vmatmul.mubr.f32.gmra.mrb[0].mxu0 %v445
        %v564 = vpop.f32.mrb[0].mxu0
        %v565 = vadd.f32 0.0, %v564
        %v566 = vpop.f32.mrb[0].mxu0
        %567 = vmatprep.mubr.f32.mxu0 0.0
        %568 = vmatmul.mubr.f32.gmra.mrb[0].mxu0 %v448
        %v569 = vpop.f32.mrb[0].mxu0
        %v570 = vadd.f32 0.0, %v569
        %v571 = vpop.f32.mrb[0].mxu0
        %572 = vmatprep.mubr.f32.mxu0 0.0
        %573 = vmatmul.mubr.f32.gmra.mrb[0].mxu0 %v451
        %v574 = vpop.f32.mrb[0].mxu0
        %v575 = vadd.f32 0.0, %v574
        %v576 = vpop.f32.mrb[0].mxu0
        %577 = vmatprep.mubr.f32.mxu0 0.0
        %578 = vmatmul.mubr.f32.gmra.mrb[0].mxu0 %v454
        %v579 = vpop.f32.mrb[0].mxu0
        %v580 = vadd.f32 0.0, %v579
        %v581 = vpop.f32.mrb[0].mxu0
        %582 = vmatprep.mubr.f32.mxu0 0.0
        %583 = vmatmul.mubr.f32.gmra.mrb[0].mxu0 %v457
        %v584 = vpop.f32.mrb[0].mxu0
        %v585 = vadd.f32 0.0, %v584
        %v586 = vpop.f32.mrb[0].mxu0
        %587 = vmatprep.mubr.f32.mxu0 0.0
        %588 = vmatmul.mubr.f32.gmra.mrb[0].mxu0 %v460
        %v589 = vpop.f32.mrb[0].mxu0
        %v590 = vadd.f32 0.0, %v589
        %v591 = vpop.f32.mrb[0].mxu0
        %592 = vmatprep.mubr.f32.mxu0 0.0
        %593 = vmatmul.mubr.f32.gmra.mrb[0].mxu0 %v463
        %v594 = vpop.f32.mrb[0].mxu0
        %v595 = vadd.f32 0.0, %v594
        %v596 = vpop.f32.mrb[0].mxu0
        %597 = vmatprep.mubr.f32.mxu0 0.0
        %598 = vmatmul.mubr.f32.gmra.mrb[0].mxu0 %v466
        %v599 = vpop.f32.mrb[0].mxu0
        %v600 = vadd.f32 0.0, %v599
        %v601 = vpop.f32.mrb[0].mxu0
        %602 = vmatprep.mubr.f32.mxu0 0.0
        %603 = vmatmul.mubr.f32.gmra.mrb[0].mxu0 %v469
        %v604 = vpop.f32.mrb[0].mxu0
        %v605 = vadd.f32 0.0, %v604
        %v606 = vpop.f32.mrb[0].mxu0
        %607 = vmatprep.mubr.f32.mxu0 0.0
        %608 = vmatmul.mubr.f32.gmra.mrb[0].mxu0 %v472
        %v609 = vpop.f32.mrb[0].mxu0
        %v610 = vadd.f32 0.0, %v609
        %v611 = vpop.f32.mrb[0].mxu0
        %612 = vmatprep.mubr.f32.mxu0 0.0
        %613 = vmatmul.mubr.f32.gmra.mrb[0].mxu0 %v475
        %v614 = vpop.f32.mrb[0].mxu0
        %v615 = vadd.f32 0.0, %v614
        %v616 = vpop.f32.mrb[0].mxu0
        %617 = vmatprep.mubr.f32.mxu0 0.0
        %618 = vmatmul.mubr.f32.gmra.mrb[0].mxu0 %v478
        %v619 = vpop.f32.mrb[0].mxu0
        %v620 = vadd.f32 0.0, %v619
        %v621 = vpop.f32.mrb[0].mxu0
        %622 = vmatprep.mubr.f32.mxu0 0.0
        %623 = vmatmul.mubr.f32.gmra.mrb[0].mxu0 %v481
        %v624 = vpop.f32.mrb[0].mxu0
        %v625 = vadd.f32 0.0, %v624
        %v626 = vpop.f32.mrb[0].mxu0
        %627 = vmatprep.mubr.f32.mxu0 0.0
        %628 = vmatmul.mubr.f32.gmra.mrb[0].mxu0 %v484
        %v629 = vpop.f32.mrb[0].mxu0
        %v630 = vadd.f32 0.0, %v629
        %v631 = vpop.f32.mrb[0].mxu0
        %632 = vmatprep.mubr.f32.mxu0 0.0
        %633 = vmatmul.mubr.f32.gmra.mrb[0].mxu0 %v487
        %v634 = vpop.f32.mrb[0].mxu0
        %v635 = vadd.f32 0.0, %v634
        %v636 = vpop.f32.mrb[0].mxu0
        %637 = vdwg.mxu0
        %v639 = vsel %vm440, %v413, 0
        %v642 = vsel %vm440, %v414, 0
        %v645 = vsel %vm489, %v435, 0
        %647 = vmatprep.subr.mxu0 0.0
        %648 = vmatpush1.msra.mxu0 %v433
        %649 = vmatprep.subr.mxu0 0.0
        %650 = vmatpush1.msra.mxu0 %v434
        %651 = vmatprep.subr.mxu0 0.0
        %652 = vmatpush1.msra.mxu0 %v645
        %653 = vmatprep.subr.mxu0 0.0
        %654 = vmatpush1.msra.mxu0 0.0
        %655 = vmatprep.subr.mxu0 0.0
        %656 = vmatpush1.msra.mxu0 0.0
        %657 = vmatprep.subr.mxu0 0.0
        %658 = vmatpush1.msra.mxu0 0.0
        %659 = vmatprep.subr.mxu0 0.0
        %660 = vmatpush1.msra.mxu0 0.0
        %661 = vmatprep.subr.mxu0 0.0
        %662 = vmatpush1.msra.mxu0 0.0
        %663 = vmatprep.subr.mxu0 0.0
        %664 = vmatpush1.msra.mxu0 0.0
        %665 = vmatprep.subr.mxu0 0.0
        %666 = vmatpush1.msra.mxu0 0.0
        %667 = vmatprep.subr.mxu0 0.0
        %668 = vmatpush1.msra.mxu0 0.0
        %669 = vmatprep.subr.mxu0 0.0
        %670 = vmatpush1.msra.mxu0 0.0
        %671 = vmatprep.subr.mxu0 0.0
        %672 = vmatpush1.msra.mxu0 0.0
        %673 = vmatprep.subr.mxu0 0.0
        %674 = vmatpush1.msra.mxu0 0.0
        %675 = vmatprep.subr.mxu0 0.0
        %676 = vmatpush1.msra.mxu0 0.0
        %677 = vmatprep.subr.mxu0 0.0
        %678 = vmatpush1.msra.mxu0 0.0
        %679 = vmatprep.subr.mxu0 0.0
        %680 = vmatpush1.msra.mxu0 0.0
        %681 = vmatprep.subr.mxu0 0.0
        %682 = vmatpush1.msra.mxu0 0.0
        %683 = vmatprep.subr.mxu0 0.0
        %684 = vmatpush1.msra.mxu0 0.0
        %685 = vmatprep.subr.mxu0 0.0
        %686 = vmatpush1.msra.mxu0 0.0
        %687 = vmatprep.subr.mxu0 0.0
        %688 = vmatpush1.msra.mxu0 0.0
        %689 = vmatprep.subr.mxu0 0.0
        %690 = vmatpush1.msra.mxu0 0.0
        %691 = vmatprep.subr.mxu0 0.0
        %692 = vmatpush1.msra.mxu0 0.0
        %693 = vmatprep.subr.mxu0 0.0
        %694 = vmatpush1.msra.mxu0 0.0
        %695 = vmatprep.subr.mxu0 0.0
        %696 = vmatpush1.msra.mxu0 0.0
        %697 = vmatprep.subr.mxu0 0.0
        %698 = vmatpush1.msra.mxu0 0.0
        %699 = vmatprep.subr.mxu0 0.0
        %700 = vmatpush1.msra.mxu0 0.0
        %701 = vmatprep.subr.mxu0 0.0
        %702 = vmatpush1.msra.mxu0 0.0
        %703 = vmatprep.subr.mxu0 0.0
        %704 = vmatpush1.msra.mxu0 0.0
        %705 = vmatprep.subr.mxu0 0.0
        %706 = vmatpush1.msra.mxu0 0.0
        %707 = vmatprep.subr.mxu0 0.0
        %708 = vmatpush1.msra.mxu0 0.0
        %709 = vmatprep.subr.mxu0 0.0
        %710 = vmatpush1.msra.mxu0 0.0
        %711 = vmatprep.mubr.f32.mxu0 0.0
        %712 = vmatmul.mubr.f32.gmra.mrb[0].mxu0 %v639
        %v713 = vpop.f32.mrb[0].mxu0
        %v714 = vadd.f32 %v560, %v713
        %v715 = vpop.f32.mrb[0].mxu0
        %716 = vmatprep.mubr.f32.mxu0 0.0
        %717 = vmatmul.mubr.f32.gmra.mrb[0].mxu0 %v642
        %v718 = vpop.f32.mrb[0].mxu0
        %v719 = vadd.f32 %v565, %v718
        %v720 = vpop.f32.mrb[0].mxu0
        %721 = vmatprep.mubr.f32.mxu0 0.0
        %722 = vmatmul.mubr.f32.gmra.mrb[0].mxu0 %v442
        %v723 = vpop.f32.mrb[0].mxu0
        %v724 = vadd.f32 %v570, %v723
        %v725 = vpop.f32.mrb[0].mxu0
        %726 = vmatprep.mubr.f32.mxu0 0.0
        %727 = vmatmul.mubr.f32.gmra.mrb[0].mxu0 %v445
        %v728 = vpop.f32.mrb[0].mxu0
        %v729 = vadd.f32 %v575, %v728
        %v730 = vpop.f32.mrb[0].mxu0
        %731 = vmatprep.mubr.f32.mxu0 0.0
        %732 = vmatmul.mubr.f32.gmra.mrb[0].mxu0 %v448
        %v733 = vpop.f32.mrb[0].mxu0
        %v734 = vadd.f32 %v580, %v733
        %v735 = vpop.f32.mrb[0].mxu0
        %736 = vmatprep.mubr.f32.mxu0 0.0
        %737 = vmatmul.mubr.f32.gmra.mrb[0].mxu0 %v451
        %v738 = vpop.f32.mrb[0].mxu0
        %v739 = vadd.f32 %v585, %v738
        %v740 = vpop.f32.mrb[0].mxu0
        %741 = vmatprep.mubr.f32.mxu0 0.0
        %742 = vmatmul.mubr.f32.gmra.mrb[0].mxu0 %v454
        %v743 = vpop.f32.mrb[0].mxu0
        %v744 = vadd.f32 %v590, %v743
        %v745 = vpop.f32.mrb[0].mxu0
        %746 = vmatprep.mubr.f32.mxu0 0.0
        %747 = vmatmul.mubr.f32.gmra.mrb[0].mxu0 %v457
        %v748 = vpop.f32.mrb[0].mxu0
        %v749 = vadd.f32 %v595, %v748
        %v750 = vpop.f32.mrb[0].mxu0
        %751 = vmatprep.mubr.f32.mxu0 0.0
        %752 = vmatmul.mubr.f32.gmra.mrb[0].mxu0 %v460
        %v753 = vpop.f32.mrb[0].mxu0
        %v754 = vadd.f32 %v600, %v753
        %v755 = vpop.f32.mrb[0].mxu0
        %756 = vmatprep.mubr.f32.mxu0 0.0
        %757 = vmatmul.mubr.f32.gmra.mrb[0].mxu0 %v463
        %v758 = vpop.f32.mrb[0].mxu0
        %v759 = vadd.f32 %v605, %v758
        %v760 = vpop.f32.mrb[0].mxu0
        %761 = vmatprep.mubr.f32.mxu0 0.0
        %762 = vmatmul.mubr.f32.gmra.mrb[0].mxu0 %v466
        %v763 = vpop.f32.mrb[0].mxu0
        %v764 = vadd.f32 %v610, %v763
        %v765 = vpop.f32.mrb[0].mxu0
        %766 = vmatprep.mubr.f32.mxu0 0.0
        %767 = vmatmul.mubr.f32.gmra.mrb[0].mxu0 %v469
        %v768 = vpop.f32.mrb[0].mxu0
        %v769 = vadd.f32 %v615, %v768
        %v770 = vpop.f32.mrb[0].mxu0
        %771 = vmatprep.mubr.f32.mxu0 0.0
        %772 = vmatmul.mubr.f32.gmra.mrb[0].mxu0 %v472
        %v773 = vpop.f32.mrb[0].mxu0
        %v774 = vadd.f32 %v620, %v773
        %v775 = vpop.f32.mrb[0].mxu0
        %776 = vmatprep.mubr.f32.mxu0 0.0
        %777 = vmatmul.mubr.f32.gmra.mrb[0].mxu0 %v475
        %v778 = vpop.f32.mrb[0].mxu0
        %v779 = vadd.f32 %v625, %v778
        %v780 = vpop.f32.mrb[0].mxu0
        %781 = vmatprep.mubr.f32.mxu0 0.0
        %782 = vmatmul.mubr.f32.gmra.mrb[0].mxu0 %v478
        %v783 = vpop.f32.mrb[0].mxu0
        %v784 = vadd.f32 %v630, %v783
        %v785 = vpop.f32.mrb[0].mxu0
        %786 = vmatprep.mubr.f32.mxu0 0.0
        %787 = vmatmul.mubr.f32.gmra.mrb[0].mxu0 %v481
        %v788 = vpop.f32.mrb[0].mxu0
        %v789 = vadd.f32 %v635, %v788
        %v790 = vpop.f32.mrb[0].mxu0
        %791 = vdwg.mxu0
        %s792 = scalar_lea.vmem %s1, 48
        %v793 = vld [vmem:[%s792] sm:$0xff]
        %v794 = vld [vmem:[%s792 + $0x8] sm:$0xff]
        %v795 = vld [vmem:[%s792 + $0x10] sm:$0x3]
        %v797 = vsel %vm440, %v431, 0
        %v800 = vsel %vm440, %v432, 0
        %v803 = vsel %vm489, %v795, 0
        %805 = vmatprep.subr.mxu0 0.0
        %806 = vmatpush1.msra.mxu0 %v793
        %807 = vmatprep.subr.mxu0 0.0
        %808 = vmatpush1.msra.mxu0 %v794
        %809 = vmatprep.subr.mxu0 0.0
        %810 = vmatpush1.msra.mxu0 %v803
        %811 = vmatprep.subr.mxu0 0.0
        %812 = vmatpush1.msra.mxu0 0.0
        %813 = vmatprep.subr.mxu0 0.0
        %814 = vmatpush1.msra.mxu0 0.0
        %815 = vmatprep.subr.mxu0 0.0
        %816 = vmatpush1.msra.mxu0 0.0
        %817 = vmatprep.subr.mxu0 0.0
        %818 = vmatpush1.msra.mxu0 0.0
        %819 = vmatprep.subr.mxu0 0.0
        %820 = vmatpush1.msra.mxu0 0.0
        %821 = vmatprep.subr.mxu0 0.0
        %822 = vmatpush1.msra.mxu0 0.0
        %823 = vmatprep.subr.mxu0 0.0
        %824 = vmatpush1.msra.mxu0 0.0
        %825 = vmatprep.subr.mxu0 0.0
        %826 = vmatpush1.msra.mxu0 0.0
        %827 = vmatprep.subr.mxu0 0.0
        %828 = vmatpush1.msra.mxu0 0.0
        %829 = vmatprep.subr.mxu0 0.0
        %830 = vmatpush1.msra.mxu0 0.0
        %831 = vmatprep.subr.mxu0 0.0
        %832 = vmatpush1.msra.mxu0 0.0
        %833 = vmatprep.subr.mxu0 0.0
        %834 = vmatpush1.msra.mxu0 0.0
        %835 = vmatprep.subr.mxu0 0.0
        %836 = vmatpush1.msra.mxu0 0.0
        %837 = vmatprep.subr.mxu0 0.0
        %838 = vmatpush1.msra.mxu0 0.0
        %839 = vmatprep.subr.mxu0 0.0
        %840 = vmatpush1.msra.mxu0 0.0
        %841 = vmatprep.subr.mxu0 0.0
        %842 = vmatpush1.msra.mxu0 0.0
        %843 = vmatprep.subr.mxu0 0.0
        %844 = vmatpush1.msra.mxu0 0.0
        %845 = vmatprep.subr.mxu0 0.0
        %846 = vmatpush1.msra.mxu0 0.0
        %847 = vmatprep.subr.mxu0 0.0
        %848 = vmatpush1.msra.mxu0 0.0
        %849 = vmatprep.subr.mxu0 0.0
        %850 = vmatpush1.msra.mxu0 0.0
        %851 = vmatprep.subr.mxu0 0.0
        %852 = vmatpush1.msra.mxu0 0.0
        %853 = vmatprep.subr.mxu0 0.0
        %854 = vmatpush1.msra.mxu0 0.0
        %855 = vmatprep.subr.mxu0 0.0
        %856 = vmatpush1.msra.mxu0 0.0
        %857 = vmatprep.subr.mxu0 0.0
        %858 = vmatpush1.msra.mxu0 0.0
        %859 = vmatprep.subr.mxu0 0.0
        %860 = vmatpush1.msra.mxu0 0.0
        %861 = vmatprep.subr.mxu0 0.0
        %862 = vmatpush1.msra.mxu0 0.0
        %863 = vmatprep.subr.mxu0 0.0
        %864 = vmatpush1.msra.mxu0 0.0
        %865 = vmatprep.subr.mxu0 0.0
        %866 = vmatpush1.msra.mxu0 0.0
        %867 = vmatprep.subr.mxu0 0.0
        %868 = vmatpush1.msra.mxu0 0.0
        %869 = vmatprep.mubr.f32.mxu0 0.0
        %870 = vmatmul.mubr.f32.gmra.mrb[0].mxu0 %v448
        %v871 = vpop.f32.mrb[0].mxu0
        %v872 = vadd.f32 0.0, %v871
        %v873 = vpop.f32.mrb[0].mxu0
        %874 = vmatprep.mubr.f32.mxu0 0.0
        %875 = vmatmul.mubr.f32.gmra.mrb[0].mxu0 %v451
        %v876 = vpop.f32.mrb[0].mxu0
        %v877 = vadd.f32 0.0, %v876
        %v878 = vpop.f32.mrb[0].mxu0
        %879 = vmatprep.mubr.f32.mxu0 0.0
        %880 = vmatmul.mubr.f32.gmra.mrb[0].mxu0 %v454
        %v881 = vpop.f32.mrb[0].mxu0
        %v882 = vadd.f32 0.0, %v881
        %v883 = vpop.f32.mrb[0].mxu0
        %884 = vmatprep.mubr.f32.mxu0 0.0
        %885 = vmatmul.mubr.f32.gmra.mrb[0].mxu0 %v457
        %v886 = vpop.f32.mrb[0].mxu0
        %v887 = vadd.f32 0.0, %v886
        %v888 = vpop.f32.mrb[0].mxu0
        %889 = vmatprep.mubr.f32.mxu0 0.0
        %890 = vmatmul.mubr.f32.gmra.mrb[0].mxu0 %v460
        %v891 = vpop.f32.mrb[0].mxu0
        %v892 = vadd.f32 0.0, %v891
        %v893 = vpop.f32.mrb[0].mxu0
        %894 = vmatprep.mubr.f32.mxu0 0.0
        %895 = vmatmul.mubr.f32.gmra.mrb[0].mxu0 %v463
        %v896 = vpop.f32.mrb[0].mxu0
        %v897 = vadd.f32 0.0, %v896
        %v898 = vpop.f32.mrb[0].mxu0
        %899 = vmatprep.mubr.f32.mxu0 0.0
        %900 = vmatmul.mubr.f32.gmra.mrb[0].mxu0 %v466
        %v901 = vpop.f32.mrb[0].mxu0
        %v902 = vadd.f32 0.0, %v901
        %v903 = vpop.f32.mrb[0].mxu0
        %904 = vmatprep.mubr.f32.mxu0 0.0
        %905 = vmatmul.mubr.f32.gmra.mrb[0].mxu0 %v469
        %v906 = vpop.f32.mrb[0].mxu0
        %v907 = vadd.f32 0.0, %v906
        %v908 = vpop.f32.mrb[0].mxu0
        %909 = vmatprep.mubr.f32.mxu0 0.0
        %910 = vmatmul.mubr.f32.gmra.mrb[0].mxu0 %v472
        %v911 = vpop.f32.mrb[0].mxu0
        %v912 = vadd.f32 0.0, %v911
        %v913 = vpop.f32.mrb[0].mxu0
        %914 = vmatprep.mubr.f32.mxu0 0.0
        %915 = vmatmul.mubr.f32.gmra.mrb[0].mxu0 %v475
        %v916 = vpop.f32.mrb[0].mxu0
        %v917 = vadd.f32 0.0, %v916
        %v918 = vpop.f32.mrb[0].mxu0
        %919 = vmatprep.mubr.f32.mxu0 0.0
        %920 = vmatmul.mubr.f32.gmra.mrb[0].mxu0 %v478
        %v921 = vpop.f32.mrb[0].mxu0
        %v922 = vadd.f32 0.0, %v921
        %v923 = vpop.f32.mrb[0].mxu0
        %924 = vmatprep.mubr.f32.mxu0 0.0
        %925 = vmatmul.mubr.f32.gmra.mrb[0].mxu0 %v481
        %v926 = vpop.f32.mrb[0].mxu0
        %v927 = vadd.f32 0.0, %v926
        %v928 = vpop.f32.mrb[0].mxu0
        %929 = vmatprep.mubr.f32.mxu0 0.0
        %930 = vmatmul.mubr.f32.gmra.mrb[0].mxu0 %v484
        %v931 = vpop.f32.mrb[0].mxu0
        %v932 = vadd.f32 0.0, %v931
        %v933 = vpop.f32.mrb[0].mxu0
        %934 = vmatprep.mubr.f32.mxu0 0.0
        %935 = vmatmul.mubr.f32.gmra.mrb[0].mxu0 %v487
        %v936 = vpop.f32.mrb[0].mxu0
        %v937 = vadd.f32 0.0, %v936
        %v938 = vpop.f32.mrb[0].mxu0
        %939 = vmatprep.mubr.f32.mxu0 0.0
        %940 = vmatmul.mubr.f32.gmra.mrb[0].mxu0 %v797
        %v941 = vpop.f32.mrb[0].mxu0
        %v942 = vadd.f32 0.0, %v941
        %v943 = vpop.f32.mrb[0].mxu0
        %944 = vmatprep.mubr.f32.mxu0 0.0
        %945 = vmatmul.mubr.f32.gmra.mrb[0].mxu0 %v800
        %v946 = vpop.f32.mrb[0].mxu0
        %v947 = vadd.f32 0.0, %v946
        %v948 = vpop.f32.mrb[0].mxu0
        %949 = vdwg.mxu0
        %v950 = vadd.f32 %v714, %v872
        %v951 = vadd.f32 %v719, %v877
        %v952 = vadd.f32 %v724, %v882
        %v953 = vadd.f32 %v729, %v887
        %v954 = vadd.f32 %v734, %v892
        %v955 = vadd.f32 %v739, %v897
        %v956 = vadd.f32 %v744, %v902
        %v957 = vadd.f32 %v749, %v907
        %v958 = vadd.f32 %v754, %v912
        %v959 = vadd.f32 %v759, %v917
        %v960 = vadd.f32 %v764, %v922
        %v961 = vadd.f32 %v769, %v927
        %v962 = vadd.f32 %v774, %v932
        %v963 = vadd.f32 %v779, %v937
        %v964 = vadd.f32 %v784, %v942
        %v965 = vadd.f32 %v789, %v947
        %v966 = vmax.f32 %v950, 0.0
        %v967 = vmax.f32 %v951, 0.0
        %v968 = vmax.f32 %v952, 0.0
        %v969 = vmax.f32 %v953, 0.0
        %v970 = vmax.f32 %v954, 0.0
        %v971 = vmax.f32 %v955, 0.0
        %v972 = vmax.f32 %v956, 0.0
        %v973 = vmax.f32 %v957, 0.0
        %v974 = vmax.f32 %v958, 0.0
        %v975 = vmax.f32 %v959, 0.0
        %v976 = vmax.f32 %v960, 0.0
        %v977 = vmax.f32 %v961, 0.0
        %v978 = vmax.f32 %v962, 0.0
        %v979 = vmax.f32 %v963, 0.0
        %v980 = vmax.f32 %v964, 0.0
        %v981 = vmax.f32 %v965, 0.0
        %vm982 = vcmask 523264
        %983 = vst.msk [vmem:[%s160] sm:$0xff] %vm982, %v966
        %984 = vst.msk [vmem:[%s160 + $0x8] sm:$0xff] %vm982, %v967
        %985 = vst.msk [vmem:[%s160 + $0x10] sm:$0xff] %vm982, %v968
        %986 = vst.msk [vmem:[%s160 + $0x18] sm:$0xff] %vm982, %v969
        %987 = vst.msk [vmem:[%s160 + $0x20] sm:$0xff] %vm982, %v970
        %988 = vst.msk [vmem:[%s160 + $0x28] sm:$0xff] %vm982, %v971
        %989 = vst.msk [vmem:[%s160 + $0x30] sm:$0xff] %vm982, %v972
        %990 = vst.msk [vmem:[%s160 + $0x38] sm:$0xff] %vm982, %v973
        %991 = vst.msk [vmem:[%s160 + $0x40] sm:$0xff] %vm982, %v974
        %992 = vst.msk [vmem:[%s160 + $0x48] sm:$0xff] %vm982, %v975
        %993 = vst.msk [vmem:[%s160 + $0x50] sm:$0xff] %vm982, %v976
        %994 = vst.msk [vmem:[%s160 + $0x58] sm:$0xff] %vm982, %v977
        %995 = vst.msk [vmem:[%s160 + $0x60] sm:$0xff] %vm982, %v978
        %996 = vst.msk [vmem:[%s160 + $0x68] sm:$0xff] %vm982, %v979
        %997 = vst.msk [vmem:[%s160 + $0x70] sm:$0xff] %vm982, %v980
        %998 = vst.msk [vmem:[%s160 + $0x78] sm:$0xff] %vm982, %v981
        %s999 = sand.u32 %s87, 1
        %s1000 = scalar_lea.sflag [#allocation3], %s999
        %s1001 = sand.u32 %s87, 1
        %s1002 = smul.addr %s1001, 128
        %s1003 = scalar_lea.vmem [#allocation2], %s1002
        // Predicated region
        $region29: #{tpu_custom_call.1} parent=27 // pred_check
          %p1004 = pneg %p97
        $region30: #{tpu_custom_call.1} parent=27 // pred_check_branch
          %1006 = sbr.rel (%p1004) target = $region32
        $region31: #{tpu_custom_call.1} parent=27 // pred_region
          %s1007 = smul.u32 8, %s21
          %s1009 = ssub.s32 2048, 2048
          %1010 = vsyncadd %s1000, %s1009
          %s1011 = smul.addr %s1007, 2
          %s1012 = smul.addr %s20, 32
          %s1013 = sadd.s32 %s1011, %s1012
          %s1014 = smul.addr %s1013, 128
          %s1015 = scalar_lea.hbm %s2, %s1014
          %s1016 = sshll.u32 %s1003, 4
          %s1017 = int_to_ptr.vmem [resolvable:$true] %s1016
          %1022 = dma.vmem_to_hbm [thread:$0]  %s1017, 2048, %s1015, %s1000, 128, 128, 8
        $region32: #{tpu_custom_call.1} parent=27 // pred_fallthru
          _
      $region28: #{tpu_custom_call.1} parent=5 // pred_fallthru
        _
      %p1023 = scmp.le.s32.totalorder 2, %s11
      // Predicated region
      $region33: #{tpu_custom_call.1} parent=5 // pred_check
        %p1024 = pneg %p1023
      $region34: #{tpu_custom_call.1} parent=5 // pred_check_branch
        %1026 = sbr.rel (%p1024) target = $region36
      $region35: #{tpu_custom_call.1} parent=5 // pred_region
        %s1027 = ssub.s32 %s11, 2
        // Predicated region
        $region37: #{tpu_custom_call.1} parent=35 // pred_check
          %p1028 = pneg %p103
        $region38: #{tpu_custom_call.1} parent=35 // pred_check_branch
          %1030 = sbr.rel (%p1028) target = $region40
        $region39: #{tpu_custom_call.1} parent=35 // pred_region
          %s1031 = sand.u32 %s88, 1
          %s1032 = scalar_lea.sflag [#allocation3], %s1031
          %s1033 = sand.u32 %s88, 1
          %s1034 = smul.addr %s1033, 128
          %s1035 = scalar_lea.vmem [#allocation2], %s1034
          %1036 = dma.done %s1032, 2048
        $region40: #{tpu_custom_call.1} parent=35 // pred_fallthru
          _
      $region36: #{tpu_custom_call.1} parent=5 // pred_fallthru
        _
    $region6: #{tpu_custom_call.1} parent=1 // loop_footer
      %s15 = sadd.s32 1, %s11
    $region7: #{tpu_custom_call.1} parent=1 // loop_footer_branch
      %10 = sbr.rel target = $region3
    $region8: #{tpu_custom_call.1} parent=1 // loop_exit
      _
    %1037 = vsyncpa [#allocation3], 1
    %s1038 = scalar_lea.sflag [#allocation3], 1
    %1039 = vsyncpa %s1038, 1

</llo_original>
